<compile_context>
chip_gen: v7x
topology: tpu7x:2x2x1
jax: 0.10.0
libtpu: 0.0.40
codegen_flags: <defaults>
</compile_context>

<pallas_src>
import functools

import numpy as np
import jax
import jax.numpy as jnp
from jax.experimental import pallas as pl
from jax.experimental.pallas import tpu as pltpu


_ROWS = 24  # 17 used rows padded up to a multiple of 8 sublanes.


def _label_loss_kernel(slab_ref, out_ref, *, batch_size):
    b_pad = slab_ref.shape[1]
    zero = jnp.float32(0.0)

    # Two aligned (8, B_pad) groups + the mask row: 3 loads total.
    lab = slab_ref[0:8, :]      # [l0x,l0y,l0z,laz1,l1x,l1y,l1z,laz2]
    est = slab_ref[8:16, :]     # [e0x,e0y,e0z,eaz1,e1x,e1y,e1z,eaz2]
    single = slab_ref[16:17, :]  # (1, B_pad) 'single' mask

    # Cross pairing (est1<->est0, eaz2<->eaz1) via a sublane rotation (XLU, free slot).
    est_x = pltpu.roll(est, shift=4, axis=0)

    d1 = jnp.abs(est - lab)     # rows: |e0-l0|xyz, e11, |e1-l1|xyz, e22
    d2 = jnp.abs(est_x - lab)   # rows: |e1-l0|xyz, e12, |e0-l1|xyz, e21
    sq1 = d1 * d1
    sq2 = d2 * d2
    # Azimuth wrap (only rows 3 and 7 of w1/w2 are ever used).
    w1 = jnp.where(d1 > 180.0, 360.0 - d1, d1)
    w2 = jnp.where(d2 > 180.0, 360.0 - d2, d2)

    row = jax.lax.broadcasted_iota(jnp.int32, (8, b_pad), 0)
    az_row = (row & 3) == 3            # rows 3, 7 (azimuths)
    xyz_row = jnp.logical_not(az_row)  # rows 0,1,2,4,5,6 (xyz)

    # Per-sample sublane sums (1, B_pad); factors of 3 kept until the final combine.
    pair1 = jnp.sum(jnp.where(xyz_row, sq1, zero), axis=0, keepdims=True)  # 3*(mse00+mse11)
    pair2 = jnp.sum(jnp.where(xyz_row, sq2, zero), axis=0, keepdims=True)  # 3*(mse10+mse01)
    s00x3 = jnp.sum(jnp.where(row < 3, sq1, zero), axis=0, keepdims=True)  # 3*mse00

    mixed3 = jnp.minimum(pair1, pair2)            # 3 * per-sample mixed loss
    oms_mixed3 = (1.0 - single) * mixed3          # masked: only non-'single' samples

    # Azimuth pairing condition, valid at rows 3 AND 7 simultaneously:
    # (e11-e12) + (e22-e21) < 0  <=>  e11+e22 < e12+e21
    diffw = w1 - w2
    cond8 = (diffw + pltpu.roll(diffw, shift=4, axis=0)) < 0.0
    sel_az = jnp.where(cond8, w1, w2)             # row3: MAE1 term, row7: MAE2 term

    # One fused lane reduction over a single (8, B_pad) tile.
    final = jnp.where(row == 0, single,
            jnp.where(row == 1, oms_mixed3,
            jnp.where(row == 2, s00x3,
            jnp.where(az_row, sel_az, zero))))
    col = jnp.sum(final, axis=1, keepdims=True)   # (8, 1)

    n_single = col[0:1, :]     # sum of 'single' mask
    mixed_sum3 = col[1:2, :]   # 3 * sum of mixed losses
    s00_sum3 = col[2:3, :]     # 3 * B * single_mse  (full-batch quirk)
    mae1_sum = col[3:4, :]
    mae2_sum = col[7:8, :]

    inv_b = jnp.float32(1.0 / batch_size)
    inv_3b = jnp.float32(1.0 / (3.0 * batch_size))
    loss = (n_single * s00_sum3 * inv_b + mixed_sum3) * inv_3b
    mae1 = mae1_sum * inv_b
    mae2 = mae2_sum * inv_b

    # Slim epilogue: one (1,128) lane-row store [loss, MAE1, MAE2, 0...].
    lane = jax.lax.broadcasted_iota(jnp.int32, (1, 128), 1)
    out_ref[...] = jnp.where(lane == 0, loss,
                   jnp.where(lane == 1, mae1,
                   jnp.where(lane == 2, mae2, zero)))


def _pack_slab(label, est, single, b_pad):
    """Build the lane-dense (24, B_pad) slab with minimal HLOs."""
    B = label.shape[0]
    rad2deg = jnp.float32(180.0 / np.pi)

    # TODO(synk): atan2 has no guaranteed Mosaic lowering; azimuths (O(B) elementwise)
    # are computed in JAX glue inside the same jit and packed into the slab.
    lab_az = jnp.arctan2(label[:, 1, :], label[:, 0, :]) * rad2deg        # (B, 2)
    est_r = est.reshape(B, 2, 3)
    est_az = jnp.arctan2(est_r[:, :, 1], est_r[:, :, 0]) * rad2deg        # (B, 2)

    lab_rows = jnp.concatenate(
        [jnp.transpose(label, (2, 1, 0)),                 # (2, 3, B) xyz
         jnp.transpose(lab_az, (1, 0))[:, None, :]],      # (2, 1, B) azimuth
        axis=1).reshape(8, B)                             # [l0x,l0y,l0z,laz1,l1x,l1y,l1z,laz2]
    est_rows = jnp.concatenate(
        [jnp.transpose(est_r, (1, 2, 0)),
         jnp.transpose(est_az, (1, 0))[:, None, :]],
        axis=1).reshape(8, B)                             # [e0x,e0y,e0z,eaz1,e1x,e1y,e1z,eaz2]

    slab = jnp.zeros((_ROWS, b_pad), jnp.float32)
    slab = slab.at[0:8, :B].set(lab_rows)
    slab = slab.at[8:16, :B].set(est_rows)
    slab = slab.at[16, :B].set(single)
    return slab


@jax.jit
def label_loss_forward(label, est_label, mix_way_is_single):
    """label: (B, 3, 2) f32; est_label: (B, 6) f32;
    mix_way_is_single: (B,) bool/int — True where mix_way[b] == 'single'."""
    B = label.shape[0]
    label = label.astype(jnp.float32)
    est = est_label.astype(jnp.float32)
    single = mix_way_is_single.astype(jnp.float32)

    # Lane-dense slab: batch on the lane axis, zero-padded so padded lanes contribute
    # exactly 0 to every reduction inside the kernel.
    b_pad = max(128, -(-B // 128) * 128)
    slab = _pack_slab(label, est, single, b_pad)

    # TODO(synk): for large B add a 1-D 'arbitrary' grid over the lane axis
    # (2048-8192-lane blocks, <=4 MiB/block for v7x's 64 MiB VMEM) with running
    # partial sums in scratch and a pl.when(last)-finalize; the full-batch
    # single_mse term must be accumulated across all blocks, not per block.
    out = pl.pallas_call(
        functools.partial(_label_loss_kernel, batch_size=B),
        out_shape=jax.ShapeDtypeStruct((1, 128), jnp.float32),
        in_specs=[pl.BlockSpec(memory_space=pltpu.MemorySpace.VMEM)],
        out_specs=pl.BlockSpec(memory_space=pltpu.MemorySpace.VMEM),
        cost_estimate=pl.CostEstimate(
            flops=int(40 * 8 * b_pad), transcendentals=0,
            bytes_accessed=int(_ROWS * b_pad * 4 + 128 * 4)),
    )(slab)

    loss = out[0, 0]
    mae1 = out[0, 1]
    mae2 = out[0, 2]
    loss_dict = dict(sig_loss=loss, MAE1=mae1, MAE2=mae2)
    return loss, loss_dict


def _reference_numpy(label, est_label, is_single):
    """Pure-numpy transliteration of the PyTorch forward for verification."""
    label = np.asarray(label, np.float64)
    est = np.asarray(est_label, np.float64)
    B = label.shape[0]
    total = 0.0
    for b in range(B):
        if is_single[b]:
            total += np.mean((est[:, :3] - label[:, :, 0]) ** 2)
        else:
            l1 = np.mean((est[b, :3] - label[b, :, 0]) ** 2) + np.mean((est[b, 3:] - label[b, :, 1]) ** 2)
            l2 = np.mean((est[b, 3:] - label[b, :, 0]) ** 2) + np.mean((est[b, :3] - label[b, :, 1]) ** 2)
            total += l1 if l1 < l2 else l2
    total /= B
    la1 = np.arctan2(label[:, 1, 0], label[:, 0, 0]) / np.pi * 180
    la2 = np.arctan2(label[:, 1, 1], label[:, 0, 1]) / np.pi * 180
    ea1 = np.arctan2(est[:, 1], est[:, 0]) / np.pi * 180
    ea2 = np.arctan2(est[:, 4], est[:, 3]) / np.pi * 180
    wrap = lambda e: np.where(e > 180, 360 - e, e)
    e11, e22 = wrap(np.abs(la1 - ea1)), wrap(np.abs(la2 - ea2))
    e12, e21 = wrap(np.abs(la1 - ea2)), wrap(np.abs(la2 - ea1))
    m1 = m2 = 0.0
    for b in range(B):
        if e11[b] + e22[b] < e12[b] + e21[b]:
            m1 += e11[b]; m2 += e22[b]
        else:
            m1 += e12[b]; m2 += e21[b]
    return total, m1 / B, m2 / B


def _check(label, est_label, mask):
    loss, loss_dict = label_loss_forward(label, est_label, mask)
    loss = jax.block_until_ready(loss)
    mae1 = jax.block_until_ready(loss_dict["MAE1"])
    mae2 = jax.block_until_ready(loss_dict["MAE2"])
    ref_loss, ref_mae1, ref_mae2 = _reference_numpy(
        np.asarray(label), np.asarray(est_label), np.asarray(mask).astype(bool))
    assert np.allclose(float(loss), ref_loss, rtol=1e-4, atol=1e-4), (float(loss), ref_loss)
    assert np.allclose(float(mae1), ref_mae1, rtol=1e-4, atol=1e-3), (float(mae1), ref_mae1)
    assert np.allclose(float(mae2), ref_mae2, rtol=1e-4, atol=1e-3), (float(mae2), ref_mae2)


if __name__ == "__main__":
    key = jax.random.PRNGKey(0)
    k1, k2, k3, k4 = jax.random.split(key, 4)

    # Case 1: B=4, mix_way = ['single', 'mix', 'mix', 'single'] -> boolean mask.
    B = 4
    label = jax.random.normal(k1, (B, 3, 2), dtype=jnp.float32)
    est_label = jax.random.normal(k2, (B, 6), dtype=jnp.float32)
    mix_way_is_single = jnp.array([1, 0, 0, 1], dtype=jnp.int32)
    _check(label, est_label, mix_way_is_single)

    # Case 2: B=5 (exercises lane padding), mixed mask.
    B2 = 5
    label2 = jax.random.normal(k3, (B2, 3, 2), dtype=jnp.float32)
    est_label2 = jax.random.normal(k4, (B2, 6), dtype=jnp.float32)
    mask2 = jnp.array([0, 1, 0, 1, 0], dtype=jnp.int32)
    _check(label2, est_label2, mask2)

    print("KERNEL_OK")
</pallas_src>

<mosaic_0001>
module attributes {stable_mosaic.version = 11 : i64} {
  func.func @_label_loss_kernel(%arg0: memref<24x128xf32, #tpu.memory_space<vmem>>, %arg1: memref<1x128xf32, #tpu.memory_space<vmem>>) attributes {dimension_semantics = [], scalar_prefetch = 0 : i64, scratch_operands = 0 : i64, tpu.core_type = #tpu.core_type<tc>} {
    %c0 = arith.constant 0 : index
    %c0_0 = arith.constant 0 : index
    %0 = vector.load %arg0[%c0, %c0_0] : memref<24x128xf32, #tpu.memory_space<vmem>>, vector<8x128xf32>
    %c8 = arith.constant 8 : index
    %c0_1 = arith.constant 0 : index
    %1 = vector.load %arg0[%c8, %c0_1] : memref<24x128xf32, #tpu.memory_space<vmem>>, vector<8x128xf32>
    %c16 = arith.constant 16 : index
    %c0_2 = arith.constant 0 : index
    %2 = vector.load %arg0[%c16, %c0_2] : memref<24x128xf32, #tpu.memory_space<vmem>>, vector<1x128xf32>
    %c4_i32 = arith.constant 4 : i32
    %3 = tpu.dynamic_rotate %1 by %c4_i32 dim 0 : vector<8x128xf32>, i32 -> vector<8x128xf32>
    %4 = arith.subf %1, %0 : vector<8x128xf32>
    %5 = math.absf %4 : vector<8x128xf32>
    %6 = arith.subf %3, %0 : vector<8x128xf32>
    %7 = math.absf %6 : vector<8x128xf32>
    %8 = arith.mulf %5, %5 : vector<8x128xf32>
    %9 = arith.mulf %7, %7 : vector<8x128xf32>
    %cst = arith.constant 1.800000e+02 : f32
    %10 = vector.broadcast %cst : f32 to vector<8x128xf32>
    %11 = arith.cmpf ogt, %5, %10 : vector<8x128xf32>
    %cst_3 = arith.constant 3.600000e+02 : f32
    %12 = vector.broadcast %cst_3 : f32 to vector<8x128xf32>
    %13 = arith.subf %12, %5 : vector<8x128xf32>
    %14 = arith.select %11, %13, %5 : vector<8x128xi1>, vector<8x128xf32>
    %cst_4 = arith.constant 1.800000e+02 : f32
    %15 = vector.broadcast %cst_4 : f32 to vector<8x128xf32>
    %16 = arith.cmpf ogt, %7, %15 : vector<8x128xf32>
    %cst_5 = arith.constant 3.600000e+02 : f32
    %17 = vector.broadcast %cst_5 : f32 to vector<8x128xf32>
    %18 = arith.subf %17, %7 : vector<8x128xf32>
    %19 = arith.select %16, %18, %7 : vector<8x128xi1>, vector<8x128xf32>
    %20 = tpu.iota {dimensions = array<i32: 0>} : vector<8x128xi32>
    %c3_i32 = arith.constant 3 : i32
    %21 = vector.broadcast %c3_i32 : i32 to vector<8x128xi32>
    %22 = arith.andi %20, %21 : vector<8x128xi32>
    %c3_i32_6 = arith.constant 3 : i32
    %23 = vector.broadcast %c3_i32_6 : i32 to vector<8x128xi32>
    %24 = arith.cmpi eq, %22, %23 : vector<8x128xi32>
    %cst_7 = arith.constant dense<true> : vector<8x128xi1>
    %25 = arith.xori %24, %cst_7 : vector<8x128xi1>
    %cst_8 = arith.constant 0.000000e+00 : f32
    %26 = vector.broadcast %cst_8 : f32 to vector<8x128xf32>
    %27 = arith.select %25, %8, %26 : vector<8x128xi1>, vector<8x128xf32>
    %cst_9 = arith.constant dense<0.000000e+00> : vector<128xf32>
    %28 = vector.multi_reduction <add>, %27, %cst_9 [0] : vector<8x128xf32> to vector<128xf32>
    %29 = vector.shape_cast %28 : vector<128xf32> to vector<1x128xf32>
    %cst_10 = arith.constant 0.000000e+00 : f32
    %30 = vector.broadcast %cst_10 : f32 to vector<8x128xf32>
    %31 = arith.select %25, %9, %30 : vector<8x128xi1>, vector<8x128xf32>
    %cst_11 = arith.constant dense<0.000000e+00> : vector<128xf32>
    %32 = vector.multi_reduction <add>, %31, %cst_11 [0] : vector<8x128xf32> to vector<128xf32>
    %33 = vector.shape_cast %32 : vector<128xf32> to vector<1x128xf32>
    %c3_i32_12 = arith.constant 3 : i32
    %34 = vector.broadcast %c3_i32_12 : i32 to vector<8x128xi32>
    %35 = arith.cmpi slt, %20, %34 : vector<8x128xi32>
    %cst_13 = arith.constant 0.000000e+00 : f32
    %36 = vector.broadcast %cst_13 : f32 to vector<8x128xf32>
    %37 = arith.select %35, %8, %36 : vector<8x128xi1>, vector<8x128xf32>
    %cst_14 = arith.constant dense<0.000000e+00> : vector<128xf32>
    %38 = vector.multi_reduction <add>, %37, %cst_14 [0] : vector<8x128xf32> to vector<128xf32>
    %39 = vector.shape_cast %38 : vector<128xf32> to vector<1x128xf32>
    %40 = arith.minimumf %29, %33 : vector<1x128xf32>
    %cst_15 = arith.constant 1.000000e+00 : f32
    %41 = vector.broadcast %cst_15 : f32 to vector<1x128xf32>
    %42 = arith.subf %41, %2 : vector<1x128xf32>
    %43 = arith.mulf %42, %40 : vector<1x128xf32>
    %44 = arith.subf %14, %19 : vector<8x128xf32>
    %c4_i32_16 = arith.constant 4 : i32
    %45 = tpu.dynamic_rotate %44 by %c4_i32_16 dim 0 : vector<8x128xf32>, i32 -> vector<8x128xf32>
    %46 = arith.addf %44, %45 : vector<8x128xf32>
    %cst_17 = arith.constant 0.000000e+00 : f32
    %47 = vector.broadcast %cst_17 : f32 to vector<8x128xf32>
    %48 = arith.cmpf olt, %46, %47 : vector<8x128xf32>
    %49 = arith.select %48, %14, %19 : vector<8x128xi1>, vector<8x128xf32>
    %c0_i32 = arith.constant 0 : i32
    %50 = vector.broadcast %c0_i32 : i32 to vector<8x128xi32>
    %51 = arith.cmpi eq, %20, %50 : vector<8x128xi32>
    %c1_i32 = arith.constant 1 : i32
    %52 = vector.broadcast %c1_i32 : i32 to vector<8x128xi32>
    %53 = arith.cmpi eq, %20, %52 : vector<8x128xi32>
    %c2_i32 = arith.constant 2 : i32
    %54 = vector.broadcast %c2_i32 : i32 to vector<8x128xi32>
    %55 = arith.cmpi eq, %20, %54 : vector<8x128xi32>
    %cst_18 = arith.constant 0.000000e+00 : f32
    %56 = vector.broadcast %cst_18 : f32 to vector<8x128xf32>
    %57 = arith.select %24, %49, %56 : vector<8x128xi1>, vector<8x128xf32>
    %58 = vector.shape_cast %39 : vector<1x128xf32> to vector<1x128xf32>
    %59 = vector.broadcast %58 : vector<1x128xf32> to vector<8x128xf32>
    %60 = arith.select %55, %59, %57 : vector<8x128xi1>, vector<8x128xf32>
    %61 = vector.shape_cast %43 : vector<1x128xf32> to vector<1x128xf32>
    %62 = vector.broadcast %61 : vector<1x128xf32> to vector<8x128xf32>
    %63 = arith.select %53, %62, %60 : vector<8x128xi1>, vector<8x128xf32>
    %64 = vector.shape_cast %2 : vector<1x128xf32> to vector<1x128xf32>
    %65 = vector.broadcast %64 : vector<1x128xf32> to vector<8x128xf32>
    %66 = arith.select %51, %65, %63 : vector<8x128xi1>, vector<8x128xf32>
    %cst_19 = arith.constant dense<0.000000e+00> : vector<8xf32>
    %67 = vector.multi_reduction <add>, %66, %cst_19 [1] : vector<8x128xf32> to vector<8xf32>
    %68 = vector.shape_cast %67 : vector<8xf32> to vector<8x1xf32>
    %69 = vector.extract_strided_slice %68 {offsets = [0, 0], sizes = [1, 1], strides = [1, 1]} : vector<8x1xf32> to vector<1x1xf32>
    %70 = vector.extract_strided_slice %68 {offsets = [1, 0], sizes = [1, 1], strides = [1, 1]} : vector<8x1xf32> to vector<1x1xf32>
    %71 = vector.extract_strided_slice %68 {offsets = [2, 0], sizes = [1, 1], strides = [1, 1]} : vector<8x1xf32> to vector<1x1xf32>
    %72 = vector.extract_strided_slice %68 {offsets = [3, 0], sizes = [1, 1], strides = [1, 1]} : vector<8x1xf32> to vector<1x1xf32>
    %73 = vector.extract_strided_slice %68 {offsets = [7, 0], sizes = [1, 1], strides = [1, 1]} : vector<8x1xf32> to vector<1x1xf32>
    %74 = arith.mulf %69, %71 : vector<1x1xf32>
    %cst_20 = arith.constant 2.500000e-01 : f32
    %75 = vector.broadcast %cst_20 : f32 to vector<1x1xf32>
    %76 = arith.mulf %74, %75 : vector<1x1xf32>
    %77 = arith.addf %76, %70 : vector<1x1xf32>
    %cst_21 = arith.constant 0.0833333358 : f32
    %78 = vector.broadcast %cst_21 : f32 to vector<1x1xf32>
    %79 = arith.mulf %77, %78 : vector<1x1xf32>
    %cst_22 = arith.constant 2.500000e-01 : f32
    %80 = vector.broadcast %cst_22 : f32 to vector<1x1xf32>
    %81 = arith.mulf %72, %80 : vector<1x1xf32>
    %cst_23 = arith.constant 2.500000e-01 : f32
    %82 = vector.broadcast %cst_23 : f32 to vector<1x1xf32>
    %83 = arith.mulf %73, %82 : vector<1x1xf32>
    %84 = tpu.iota {dimensions = array<i32: 1>} : vector<1x128xi32>
    %c0_i32_24 = arith.constant 0 : i32
    %85 = vector.broadcast %c0_i32_24 : i32 to vector<1x128xi32>
    %86 = arith.cmpi eq, %84, %85 : vector<1x128xi32>
    %c1_i32_25 = arith.constant 1 : i32
    %87 = vector.broadcast %c1_i32_25 : i32 to vector<1x128xi32>
    %88 = arith.cmpi eq, %84, %87 : vector<1x128xi32>
    %c2_i32_26 = arith.constant 2 : i32
    %89 = vector.broadcast %c2_i32_26 : i32 to vector<1x128xi32>
    %90 = arith.cmpi eq, %84, %89 : vector<1x128xi32>
    %cst_27 = arith.constant 0.000000e+00 : f32
    %91 = vector.shape_cast %83 : vector<1x1xf32> to vector<1x1xf32>
    %92 = vector.broadcast %91 : vector<1x1xf32> to vector<1x128xf32>
    %93 = vector.broadcast %cst_27 : f32 to vector<1x128xf32>
    %94 = arith.select %90, %92, %93 : vector<1x128xi1>, vector<1x128xf32>
    %95 = vector.shape_cast %81 : vector<1x1xf32> to vector<1x1xf32>
    %96 = vector.broadcast %95 : vector<1x1xf32> to vector<1x128xf32>
    %97 = arith.select %88, %96, %94 : vector<1x128xi1>, vector<1x128xf32>
    %98 = vector.shape_cast %79 : vector<1x1xf32> to vector<1x1xf32>
    %99 = vector.broadcast %98 : vector<1x1xf32> to vector<1x128xf32>
    %100 = arith.select %86, %99, %97 : vector<1x128xi1>, vector<1x128xf32>
    %c0_28 = arith.constant 0 : index
    %c0_29 = arith.constant 0 : index
    %101 = vector.load %arg1[%c0_28, %c0_29] : memref<1x128xf32, #tpu.memory_space<vmem>>, vector<1x128xf32>
    tpu.vector_store %arg1[%c0_28, %c0_29], %100 {strides = array<i32>} : memref<1x128xf32, #tpu.memory_space<vmem>>, vector<1x128xf32>,
    return
  }
}

</mosaic_0001>

<llo_original>
// kernel: label_loss_forward.1
$region0: #{label_loss_forward.1}
  #allocation0 [shape = 'u32[]', space=smem, size = 0x4, offset = 0x4, fixed_abs, tag = 'smem constant byte address 0x4 - core index']
  #allocation1 [shape = 'u32[144,128]{1,0:T(1,128)}', space=vmem, size = 0x12000, scoped, tag = 'internal scratch']
  %s0 = inlined_call_operand.vmem [shape: f32[24,128], index: 0, kind: input, shape index: {}]
  %s1 = inlined_call_operand.vmem [shape: f32[1,128], index: 1, kind: output, shape index: {}]
  %s2 = sld [smem:[#allocation0]]
  $region14: #{label_loss_forward.1} parent=0
    _
  %s4 = ssub.s32 1, %s2
  %s5 = scalar_select 0, %s4, %s2
  // Predicated region
  $region2: #{label_loss_forward.1} parent=0 // pred_check
    _
  $region3: #{label_loss_forward.1} parent=0 // pred_check_branch
    %7 = sbr.rel (0) target = $region5
  $region4: #{label_loss_forward.1} parent=0 // pred_region
    _
  $region5: #{label_loss_forward.1} parent=0 // pred_fallthru
    _
  %v8 = vld [vmem:[%s0] sm:$0xff]
  %v9 = vld [vmem:[%s0 + $0x8] sm:$0xff]
  %v10 = vld [vmem:[%s0 + $0x10] sm:$0x1]
  %v11 = vrot.slane %v9, 4
  %v12 = vsub.f32 %v9, %v8
  %v13 = vand.u32 2147483647, %v12
  %v14 = vsub.f32 %v11, %v8
  %v15 = vand.u32 2147483647, %v14
  %v16 = vmul.f32 %v13, %v13
  %v17 = vmul.f32 %v15, %v15
  %vm18 = vcmp.gt.f32.partialorder %v13, 180.0
  %v19 = vsub.f32 360.0, %v13
  %v20 = vsel %vm18, %v19, %v13
  %vm21 = vcmp.gt.f32.partialorder %v15, 180.0
  %v22 = vsub.f32 360.0, %v15
  %v23 = vsel %vm21, %v22, %v15
  %v24 = vlaneseq
  %v25 = vshrl.u32 %v24, 7
  %v26 = vand.u32 %v25, 3
  %vm27 = vcmp.eq.s32.totalorder %v26, 3
  %vm28 = vmxor %vm27, 1
  %v29 = vsel %vm28, %v16, 0.0
  %v30 = vrot.slane %v29, 4
  %v31 = vadd.f32 %v29, %v30
  %v32 = vrot.slane %v31, 2
  %v33 = vadd.f32 %v31, %v32
  %v34 = vrot.slane %v33, 1
  %v35 = vadd.f32 %v33, %v34
  %v36 = vsel %vm28, %v17, 0.0
  %v37 = vrot.slane %v36, 4
  %v38 = vadd.f32 %v36, %v37
  %v39 = vrot.slane %v38, 2
  %v40 = vadd.f32 %v38, %v39
  %v41 = vrot.slane %v40, 1
  %v42 = vadd.f32 %v40, %v41
  %vm43 = vcmp.lt.s32.totalorder %v25, 3
  %v44 = vsel %vm43, %v16, 0.0
  %v45 = vrot.slane %v44, 4
  %v46 = vadd.f32 %v44, %v45
  %v47 = vrot.slane %v46, 2
  %v48 = vadd.f32 %v46, %v47
  %v49 = vrot.slane %v48, 1
  %v50 = vadd.f32 %v48, %v49
  %v51 = vmin.f32 %v35, %v42
  %v52 = vsub.f32 1.0, %v10
  %v53 = vmul.f32 %v52, %v51
  %v54 = vsub.f32 %v20, %v23
  %v55 = vrot.slane %v54, 4
  %v56 = vadd.f32 %v54, %v55
  %vm57 = vcmp.lt.f32.partialorder %v56, 0.0
  %v58 = vsel %vm57, %v20, %v23
  %vm59 = vcmp.eq.s32.totalorder %v25, 0
  %vm60 = vcmp.eq.s32.totalorder %v25, 1
  %vm61 = vcmp.eq.s32.totalorder %v25, 2
  %v62 = vsel %vm27, %v58, 0.0
  %v63 = vsel %vm61, %v50, %v62
  %v64 = vlaneseq
  %v65 = vshrl.u32 %v64, 7
  %v66 = vsub.s32 0, %v65
  %v67 = vrot.slane %v53, %v66
  %v68 = vsel %vm60, %v67, %v63
  %v69 = vlaneseq
  %v70 = vshrl.u32 %v69, 7
  %v71 = vsub.s32 0, %v70
  %v72 = vrot.slane %v10, %v71
  %v73 = vsel %vm59, %v72, %v68
  %74 = vadd.xlane.f32.xlu0 %v73
  %v75 = vpop.xlane.xlu0 %74
  %v77 = vrot.slane %v75, 2
  %v79 = vmul.f32 %v75, %v77
  %v80 = vmul.f32 %v79, 0.25
  %v81 = vrot.slane %v75, 1
  %v83 = vadd.f32 %v80, %v81
  %v84 = vmul.f32 %v83, 0.083333336
  %v85 = vmul.f32 %v75, 0.25
  %v86 = vlaneseq
  %v87 = vand.u32 %v86, 127
  %vm88 = vcmp.eq.s32.totalorder %v87, 0
  %vm89 = vcmp.eq.s32.totalorder %v87, 1
  %vm90 = vcmp.eq.s32.totalorder %v87, 2
  %v91 = vsel %vm90, %v85, 0.0
  %v93 = vrot.slane %v91, 4
  %v95 = vsel %vm89, %v85, %v93
  %97 = vset.pattern.permute.xlu0 0
  %98 = vperm.xlu0 %97, %v84
  %v99 = vpop.permute.xlu0 %98
  %v102 = vrot.slane %v95, 3
  %v104 = vsel %vm88, %v99, %v102
  %105 = vst [vmem:[%s1] sm:$0x1] %v104
  // Predicated region
  $region6: #{label_loss_forward.1} parent=0 // pred_check
    _
  $region7: #{label_loss_forward.1} parent=0 // pred_check_branch
    %107 = sbr.rel (0) target = $region9
  $region8: #{label_loss_forward.1} parent=0 // pred_region
    _
  $region9: #{label_loss_forward.1} parent=0 // pred_fallthru
    _
  // Predicated region
  $region10: #{label_loss_forward.1} parent=0 // pred_check
    _
  $region11: #{label_loss_forward.1} parent=0 // pred_check_branch
    %109 = sbr.rel (0) target = $region13
  $region12: #{label_loss_forward.1} parent=0 // pred_region
    _
  $region13: #{label_loss_forward.1} parent=0 // pred_fallthru
    _

</llo_original>
